<compile_context>
chip_gen: v6e
topology: v6e:2x2x1
jax: 0.10.0
libtpu: 0.0.40
codegen_flags: <defaults>
</compile_context>

<pallas_src>
import jax
import jax.numpy as jnp
from jax.experimental import pallas as pl
from jax.experimental.pallas import tpu as pltpu

_TARGET_BLOCK_BYTES = 4 * 1024 * 1024   # ~4 MiB per pipelined block buffer
_VMEM_LIMIT_BYTES = 32 * 1024 * 1024    # 2 bufs x (in+out) x 4 MiB fits on all gens


def _locked_dropout_kernel(mask_ref, x_ref, o_ref):
    # mask_ref: (1, lblk)  -- broadcasts over the time-chunk (sublane) axis.
    # x_ref/o_ref: (tblk, lblk), lane-dense.
    o_ref[...] = x_ref[...] * mask_ref[...]


def _choose_lane_block(BH):
    """Lane-block size: multiple of 128, or the full lane extent."""
    if BH % 128 != 0:
        return BH                       # must take the full lane extent
    if BH <= 4096:
        return BH
    for cand in (4096, 3072, 2048, 1024, 512, 256, 128):
        if BH % cand == 0:
            return cand
    return 4096                         # padded final lane block (still x128)


def _choose_time_block(T, lblk, itemsize):
    """Time-block size: multiple of 8 (or full T), bounded by the byte budget."""
    rows = (_TARGET_BLOCK_BYTES // (lblk * itemsize)) // 8 * 8
    rows = max(8, min(rows, 512))
    return T if T <= rows else rows


def locked_dropout(x, p=0.5, *, seed=0, training=True):
    """x: (T, B, H) -> (T, B, H); same dropout mask applied at every time step."""
    if not training or p == 0.0:
        return x
    if not (0.0 < p < 1.0):
        raise ValueError(f"dropout probability must be in [0, 1), got {p}")

    T, B, H = x.shape
    BH = B * H

    # One mask for every time step (the "locked" part), scaled by 1/(1-p),
    # pre-cast to x's dtype so the kernel multiply needs no upcast round trip.
    keep = jax.random.bernoulli(jax.random.PRNGKey(seed), 1.0 - p, (1, BH))
    mask2 = (keep.astype(jnp.float32) / jnp.float32(1.0 - p)).astype(x.dtype)

    if BH < 128:
        # Lane dim below one vreg -> masked partial stores on every row; the
        # tensor is tiny here so a plain XLA broadcast-multiply is cheaper.
        return (x.reshape(T, BH) * mask2).reshape(T, B, H)

    x2 = x.reshape(T, BH)                                   # mask dims -> lanes
    itemsize = jnp.dtype(x.dtype).itemsize
    lblk = _choose_lane_block(BH)
    tblk = _choose_time_block(T, lblk, itemsize)
    grid = (pl.cdiv(T, tblk), pl.cdiv(BH, lblk))

    out2 = pl.pallas_call(
        _locked_dropout_kernel,
        out_shape=jax.ShapeDtypeStruct((T, BH), x.dtype),
        grid_spec=pltpu.PrefetchScalarGridSpec(
            num_scalar_prefetch=0,
            grid=grid,
            in_specs=[
                pl.BlockSpec((1, lblk), lambda i, j: (0, j)),      # mask
                pl.BlockSpec((tblk, lblk), lambda i, j: (i, j)),   # x
            ],
            out_specs=pl.BlockSpec((tblk, lblk), lambda i, j: (i, j)),
        ),
        input_output_aliases={1: 0},    # overwrite x's HBM buffer in place
        compiler_params=pltpu.CompilerParams(
            dimension_semantics=("parallel", "parallel"),
            vmem_limit_bytes=_VMEM_LIMIT_BYTES,
        ),
    )(mask2, x2)

    return out2.reshape(T, B, H)


if __name__ == "__main__":
    # LockedDropout input is [sequence length, batch size, rnn hidden size].
    T, B, H = 8, 2, 64          # B*H = 128 -> exercises the Pallas kernel path
    p = 0.5

    x = jax.random.normal(jax.random.PRNGKey(0), (T, B, H), jnp.float32)

    out = locked_dropout(x, p=p, seed=1234, training=True)
    out = jax.block_until_ready(out)

    assert out.shape == (T, B, H)
    assert bool(jnp.all(jnp.isfinite(out)))

    # "Locked" property: identical mask at every time step.
    ratio = out / x                       # 0 where dropped, 1/(1-p) where kept
    assert bool(jnp.all(jnp.abs(ratio - ratio[0:1]) < 1e-4))
    # Mask values are exactly {0, 1/(1-p)}.
    scale = 1.0 / (1.0 - p)
    is_zero = jnp.abs(ratio[0]) < 1e-4
    is_scale = jnp.abs(ratio[0] - scale) < 1e-4
    assert bool(jnp.all(jnp.logical_or(is_zero, is_scale)))

    # Eval mode / p == 0 are identity (no kernel launch).
    out_eval = locked_dropout(x, p=p, training=False)
    assert bool(jnp.all(out_eval == x))

    # Tiny-feature fallback path (B*H < 128 -> plain XLA multiply).
    x_small = jax.random.normal(jax.random.PRNGKey(1), (T, 2, 32), jnp.float32)
    out_small = jax.block_until_ready(locked_dropout(x_small, p=p, seed=7))
    assert out_small.shape == x_small.shape

    print("KERNEL_OK")
</pallas_src>

<mosaic_0001>
module attributes {stable_mosaic.version = 11 : i64} {
  func.func @_locked_dropout_kernel(%arg0: i32, %arg1: i32, %arg2: memref<1x128xf32, #tpu.memory_space<vmem>>, %arg3: memref<8x128xf32, #tpu.memory_space<vmem>>, %arg4: memref<8x128xf32, #tpu.memory_space<vmem>>) attributes {dimension_semantics = [#tpu.dimension_semantics<parallel>, #tpu.dimension_semantics<parallel>], iteration_bounds = array<i64: 1, 1>, scalar_prefetch = 0 : i64, scratch_operands = 0 : i64, tpu.core_type = #tpu.core_type<tc>, window_params = [{transform_indices = @transform_0, window_bounds = array<i64: 1, 128>}, {transform_indices = @transform_1, window_bounds = array<i64: 8, 128>}, {transform_indices = @transform_2, window_bounds = array<i64: 8, 128>}]} {
    %c0 = arith.constant 0 : index
    %c0_0 = arith.constant 0 : index
    %0 = vector.load %arg3[%c0, %c0_0] : memref<8x128xf32, #tpu.memory_space<vmem>>, vector<8x128xf32>
    %c0_1 = arith.constant 0 : index
    %c0_2 = arith.constant 0 : index
    %1 = vector.load %arg2[%c0_1, %c0_2] : memref<1x128xf32, #tpu.memory_space<vmem>>, vector<1x128xf32>
    %2 = vector.broadcast %1 : vector<1x128xf32> to vector<8x128xf32>
    %3 = arith.mulf %0, %2 : vector<8x128xf32>
    %c0_3 = arith.constant 0 : index
    %c0_4 = arith.constant 0 : index
    %4 = vector.load %arg4[%c0_3, %c0_4] : memref<8x128xf32, #tpu.memory_space<vmem>>, vector<8x128xf32>
    tpu.vector_store %arg4[%c0_3, %c0_4], %3 {strides = array<i32>} : memref<8x128xf32, #tpu.memory_space<vmem>>, vector<8x128xf32>,
    return
  }
  func.func @transform_0(%arg0: i32, %arg1: i32) -> (i32, i32) {
    %c0_i32 = arith.constant 0 : i32
    %c0_i32_0 = arith.constant 0 : i32
    return %c0_i32, %arg1 : i32, i32
  }
  func.func @transform_1(%arg0: i32, %arg1: i32) -> (i32, i32) {
    %c0_i32 = arith.constant 0 : i32
    return %arg0, %arg1 : i32, i32
  }
  func.func @transform_2(%arg0: i32, %arg1: i32) -> (i32, i32) {
    %c0_i32 = arith.constant 0 : i32
    return %arg0, %arg1 : i32, i32
  }
}

</mosaic_0001>

<llo_original>
// kernel: tpu_custom_call.1
$region0: #{tpu_custom_call.1}
  #allocation0 [shape = 'u32[]', space=smem, size = 0x4, offset = 0x4, fixed_abs, tag = 'smem constant byte address 0x4 - core index']
  #allocation1 [shape = 'u32[144,128]{1,0:T(1,128)}', space=vmem, size = 0x12000, scoped, tag = 'internal scratch']
  %s0 = inlined_call_operand.vmem [shape: f32[1,128], index: 0, kind: input, shape index: {}]
  %s1 = inlined_call_operand.hbm [shape: f32[8,128], index: 1, kind: input, shape index: {}, may-alias: {1,2}]
  %s2 = inlined_call_operand.hbm [shape: f32[8,128], index: 2, kind: output, shape index: {}, may-alias: {1,2}]
  %s3 = sld [smem:[#allocation0]]
  $region22: #{tpu_custom_call.1} parent=0
    _
  %s5 = ssub.s32 1, %s3
  %s6 = scalar_select 0, %s5, %s3
  $region1: #{tpu_custom_call.1} parent=0
    #allocation2 [shape = 'u8[4096]{0}', space=vmem, size = 0x1000, scoped, tag = 'input window, operand 1, single buffered']
    #allocation3 [shape = 's32[1]{0}', space=sflag, size = 0x4, scoped, tag = 'scoped memory for tpu_custom_call.1']
    #allocation4 [shape = 's32[1]{0}', space=sflag, size = 0x4, scoped, tag = 'scoped memory for tpu_custom_call.1']
    #allocation5 [shape = 'u8[4096]{0}', space=vmem, size = 0x1000, scoped, tag = 'output window, operand 0, single buffered']
    %7 = vsyncpa [#allocation3], 0
    %8 = vsyncpa [#allocation4], 0
    // Predicated region
    $region2: #{tpu_custom_call.1} parent=1 // pred_check
      _
    $region3: #{tpu_custom_call.1} parent=1 // pred_check_branch
      %10 = sbr.rel (0) target = $region5
    $region4: #{tpu_custom_call.1} parent=1 // pred_region
      _
    $region5: #{tpu_custom_call.1} parent=1 // pred_fallthru
      _
    // Predicated region
    $region6: #{tpu_custom_call.1} parent=1 // pred_check
      _
    $region7: #{tpu_custom_call.1} parent=1 // pred_check_branch
      %12 = sbr.rel (0) target = $region9
    $region8: #{tpu_custom_call.1} parent=1 // pred_region
      %s14 = ssub.s32 128, 128
      %15 = vsyncadd [#allocation3], %s14
      %s17 = sshll.u32 [#allocation2], 4
      %s18 = int_to_ptr.vmem [resolvable:$true] %s17
      %20 = dma.hbm_to_vmem [thread:$0]  %s1, 128, %s18, [#allocation3]
    $region9: #{tpu_custom_call.1} parent=1 // pred_fallthru
      _
    // Predicated region
    $region10: #{tpu_custom_call.1} parent=1 // pred_check
      _
    $region11: #{tpu_custom_call.1} parent=1 // pred_check_branch
      %22 = sbr.rel (0) target = $region13
    $region12: #{tpu_custom_call.1} parent=1 // pred_region
      %23 = dma.done [#allocation3], 128
    $region13: #{tpu_custom_call.1} parent=1 // pred_fallthru
      _
    %v24 = vld [vmem:[#allocation2] sm:$0xff]
    %v25 = vld [vmem:[%s0] sm:$0x1]
    %v27 = vlaneseq
    %v28 = vshrl.u32 %v27, 7
    %v29 = vsub.s32 0, %v28
    %v30 = vrot.slane %v25, %v29
    %v32 = vmul.f32 %v24, %v30
    %33 = vst [vmem:[#allocation5] sm:$0xff] %v32
    // Predicated region
    $region14: #{tpu_custom_call.1} parent=1 // pred_check
      _
    $region15: #{tpu_custom_call.1} parent=1 // pred_check_branch
      %35 = sbr.rel (0) target = $region17
    $region16: #{tpu_custom_call.1} parent=1 // pred_region
      %s37 = ssub.s32 128, 128
      %38 = vsyncadd [#allocation4], %s37
      %s40 = sshll.u32 [#allocation5], 4
      %s41 = int_to_ptr.vmem [resolvable:$true] %s40
      %43 = dma.vmem_to_hbm [thread:$0]  %s41, 128, %s2, [#allocation4]
    $region17: #{tpu_custom_call.1} parent=1 // pred_fallthru
      _
    // Predicated region
    $region18: #{tpu_custom_call.1} parent=1 // pred_check
      _
    $region19: #{tpu_custom_call.1} parent=1 // pred_check_branch
      %45 = sbr.rel (0) target = $region21
    $region20: #{tpu_custom_call.1} parent=1 // pred_region
      %46 = dma.done [#allocation4], 128
    $region21: #{tpu_custom_call.1} parent=1 // pred_fallthru
      _
    %47 = vsyncpa [#allocation3], 1
    %48 = vsyncpa [#allocation4], 1

</llo_original>
